<compile_context>
chip_gen: v7x
topology: tpu7x:2x2x1
jax: 0.10.0
libtpu: 0.0.40
codegen_flags: <defaults>
</compile_context>

<pallas_src>
import functools

import jax
import jax.numpy as jnp
from jax.experimental import pallas as pl
from jax.experimental.pallas import tpu as pltpu


def _round_up(n, m):
    return (n + m - 1) // m * m


def dueling_kernel(x_ref, w1_ref, b1_ref, w2_ref, b2_ref, wh_ref, bh_ref,
                   q_ref, *, num_actions):
    """One batch tile of the DuelingNetwork forward pass.

    MXU inputs are bf16; accumulation and all VPU elementwise math are f32.
    The output is the full lane-padded head slab; only columns [0, A) are
    meaningful q-values (the wrapper slices them out).
    """
    # Down-cast x on the VPU inside the kernel (cheap, hides under MXU) —
    # avoids a separate wrapper-side cast / extra HBM pass.
    x = x_ref[...].astype(jnp.bfloat16)

    # Trunk: Linear -> ReLU -> Linear -> ReLU
    h1 = jnp.dot(x, w1_ref[...],
                 preferred_element_type=jnp.float32) + b1_ref[...]
    h1 = jnp.maximum(h1, 0.0)
    h2 = jnp.dot(h1.astype(jnp.bfloat16), w2_ref[...],
                 preferred_element_type=jnp.float32) + b2_ref[...]
    h2 = jnp.maximum(h2, 0.0)

    # Fused dueling heads: one lane-dense matmul.
    # Column layout: [adv_0 .. adv_{A-1}, value, exact-zero padding to 128].
    head = jnp.dot(h2.astype(jnp.bfloat16), wh_ref[...],
                   preferred_element_type=jnp.float32) + bh_ref[...]

    # Padded columns are exactly zero, so a full 128-lane XLU reduce equals
    # sum(adv) + value; recover sum(adv) by subtracting value.
    row_sum = jnp.sum(head, axis=1, keepdims=True)          # (tb, 1)
    value = head[:, num_actions:num_actions + 1]             # (tb, 1)
    adv_mean = (row_sum - value) * (1.0 / num_actions)       # (tb, 1)
    offset = value - adv_mean                                # (tb, 1)

    # q_full[:, :A] = value + adv - adv_mean ; remaining lanes are junk and
    # are sliced off in the wrapper.  Full-width (lane-dense) store.
    q_ref[...] = (head + offset).astype(q_ref.dtype)


def pack_params(params):
    """Re-pack f32 params for the kernel.

    - matmul weights cast to bf16 (MXU inputs); biases stay f32
    - value/adv head weights fused into one (H2, round_up(A+1, 128)) matrix:
      columns [0, A) = adv head, column A = value head, rest zero-padded.
    """
    w1, b1 = params["w1"], params["b1"]
    w2, b2 = params["w2"], params["b2"]
    wv, bv = params["wv"], params["bv"]
    wa, ba = params["wa"], params["ba"]
    h2 = w2.shape[1]
    a = wa.shape[1]
    hpad = _round_up(a + 1, 128)

    wh = (jnp.zeros((h2, hpad), jnp.float32)
          .at[:, :a].set(wa)
          .at[:, a:a + 1].set(wv))
    bh = (jnp.zeros((1, hpad), jnp.float32)
          .at[:, :a].set(ba)
          .at[:, a:a + 1].set(bv))

    return dict(
        w1=w1.astype(jnp.bfloat16), b1=b1.astype(jnp.float32),
        w2=w2.astype(jnp.bfloat16), b2=b2.astype(jnp.float32),
        wh=wh.astype(jnp.bfloat16), bh=bh.astype(jnp.float32),
        num_actions=a,
    )


def dueling_forward(x, packed, *, batch_tile=None):
    B, obs = x.shape
    w1, b1 = packed["w1"], packed["b1"]
    w2, b2 = packed["w2"], packed["b2"]
    wh, bh = packed["wh"], packed["bh"]
    A = packed["num_actions"]
    H1 = w1.shape[1]
    H2 = w2.shape[1]
    HP = wh.shape[1]

    # --- batch-tile selection -------------------------------------------
    # Tiles are multiples of 16 (bf16 sublane packing); the batch is padded
    # to the tile instead of ever using one giant tb=B block.  Prefer the
    # largest tile that keeps grid >= 2 so both v7x TensorCores get work
    # (negligible cost on single-TC v5e/v6e); otherwise one step.
    candidates = (1024, 512, 256, 128, 64, 32, 16)
    if batch_tile is not None:
        tb = batch_tile
        assert tb % 16 == 0, "batch_tile must be a multiple of 16"
        Bp = _round_up(B, tb)
    else:
        Bp = _round_up(max(B, 16), 16)
        tb = None
        for cand in candidates:
            if Bp % cand == 0 and Bp // cand >= 2:
                tb = cand
                break
        if tb is None:  # tiny batch: single grid step
            for cand in candidates:
                if Bp % cand == 0:
                    tb = cand
                    break
    grid = Bp // tb

    if Bp != B:
        x = jnp.pad(x, ((0, Bp - B), (0, 0)))

    grid_spec = pltpu.PrefetchScalarGridSpec(
        num_scalar_prefetch=0,
        grid=(grid,),
        in_specs=[
            pl.BlockSpec((tb, obs), lambda i: (i, 0)),   # x tile (streamed, f32)
            pl.BlockSpec((obs, H1), lambda i: (0, 0)),   # w1 (resident)
            pl.BlockSpec((1, H1), lambda i: (0, 0)),     # b1
            pl.BlockSpec((H1, H2), lambda i: (0, 0)),    # w2
            pl.BlockSpec((1, H2), lambda i: (0, 0)),     # b2
            pl.BlockSpec((H2, HP), lambda i: (0, 0)),    # fused head weight
            pl.BlockSpec((1, HP), lambda i: (0, 0)),     # fused head bias
        ],
        # Lane-dense output: full 128-lane slab, unmasked stores + dense DMA.
        out_specs=pl.BlockSpec((tb, HP), lambda i: (i, 0)),
    )

    flops = 2 * Bp * (obs * H1 + H1 * H2 + H2 * HP)
    bytes_accessed = (x.size * 4                           # f32 x in
                      + (w1.size + w2.size + wh.size) * 2  # bf16 weights
                      + (b1.size + b2.size + bh.size) * 4  # f32 biases
                      + Bp * HP * 4)                       # f32 padded q out
    cost = pl.CostEstimate(flops=flops, transcendentals=0,
                           bytes_accessed=bytes_accessed)

    kernel = functools.partial(dueling_kernel, num_actions=A)
    q_full = pl.pallas_call(
        kernel,
        out_shape=jax.ShapeDtypeStruct((Bp, HP), jnp.float32),
        grid_spec=grid_spec,
        cost_estimate=cost,
        compiler_params=pltpu.CompilerParams(
            dimension_semantics=("parallel",)),
    )(x, w1, b1, w2, b2, wh, bh)

    return q_full[:B, :A]


def init_params(key, obs, action_space, hidden_1=512, hidden_2=256):
    """Deterministic init mimicking nn.Linear default U(-1/sqrt(fan_in), ...).

    Weights stored as (in_features, out_features) = transpose of PyTorch's
    layout.  Biases stored as (1, out_features) for in-kernel broadcasting.
    """
    def linear(k, fan_in, fan_out):
        kw, kb = jax.random.split(k)
        bound = 1.0 / jnp.sqrt(jnp.array(fan_in, jnp.float32))
        w = jax.random.uniform(kw, (fan_in, fan_out), jnp.float32, -bound, bound)
        b = jax.random.uniform(kb, (1, fan_out), jnp.float32, -bound, bound)
        return w, b

    k1, k2, k3, k4 = jax.random.split(key, 4)
    w1, b1 = linear(k1, obs, hidden_1)
    w2, b2 = linear(k2, hidden_1, hidden_2)
    wv, bv = linear(k3, hidden_2, 1)
    wa, ba = linear(k4, hidden_2, action_space)
    return dict(w1=w1, b1=b1, w2=w2, b2=b2, wv=wv, bv=bv, wa=wa, ba=ba)


def reference_forward(x, p):
    h1 = jnp.maximum(x @ p["w1"] + p["b1"], 0.0)
    h2 = jnp.maximum(h1 @ p["w2"] + p["b2"], 0.0)
    value = h2 @ p["wv"] + p["bv"]
    adv = h2 @ p["wa"] + p["ba"]
    return value + adv - adv.mean(axis=1, keepdims=True)


if __name__ == "__main__":
    key = jax.random.PRNGKey(0)
    kx, kp = jax.random.split(key)

    # Small shapes consistent with the module: batch=32, obs=64,
    # action_space=8, hidden sizes (128, 256).  batch_tile=16 gives a
    # 2-step "parallel" grid so the pipelined / megacore path is exercised.
    B, OBS, A = 32, 64, 8
    H1, H2 = 128, 256

    x = jax.random.normal(kx, (B, OBS), dtype=jnp.float32)
    params = init_params(kp, OBS, A, hidden_1=H1, hidden_2=H2)
    packed = pack_params(params)

    q = dueling_forward(x, packed, batch_tile=16)
    q = jax.block_until_ready(q)

    # Also exercise the auto tile selection path once.
    q_auto = jax.block_until_ready(dueling_forward(x, packed))

    q_ref = reference_forward(x, params)
    assert q.shape == (B, A)
    assert q_auto.shape == (B, A)
    # bf16 matmul inputs (f32 accumulation) -> loosened tolerance vs f32 ref.
    max_err = jnp.max(jnp.abs(q - q_ref))
    assert jnp.allclose(q, q_ref, atol=5e-2, rtol=5e-2), f"max abs err {max_err}"
    assert jnp.allclose(q_auto, q_ref, atol=5e-2, rtol=5e-2)

    print("KERNEL_OK")
</pallas_src>

<mosaic_0001>
module attributes {stable_mosaic.version = 11 : i64} {
  func.func @dueling_kernel(%arg0: i32, %arg1: memref<16x64xf32, #tpu.memory_space<vmem>>, %arg2: memref<64x128xbf16, #tpu.memory_space<vmem>>, %arg3: memref<1x128xf32, #tpu.memory_space<vmem>>, %arg4: memref<128x256xbf16, #tpu.memory_space<vmem>>, %arg5: memref<1x256xf32, #tpu.memory_space<vmem>>, %arg6: memref<256x128xbf16, #tpu.memory_space<vmem>>, %arg7: memref<1x128xf32, #tpu.memory_space<vmem>>, %arg8: memref<16x128xf32, #tpu.memory_space<vmem>>) attributes {dimension_semantics = [#tpu.dimension_semantics<parallel>], iteration_bounds = array<i64: 2>, scalar_prefetch = 0 : i64, scratch_operands = 0 : i64, tpu.core_type = #tpu.core_type<tc>, window_params = [{transform_indices = @transform_0, window_bounds = array<i64: 16, 64>}, {pipeline_mode = #tpu.pipeline_mode<synchronous>, transform_indices = @transform_1, window_bounds = array<i64: 64, 128>}, {pipeline_mode = #tpu.pipeline_mode<synchronous>, transform_indices = @transform_2, window_bounds = array<i64: 1, 128>}, {pipeline_mode = #tpu.pipeline_mode<synchronous>, transform_indices = @transform_3, window_bounds = array<i64: 128, 256>}, {pipeline_mode = #tpu.pipeline_mode<synchronous>, transform_indices = @transform_4, window_bounds = array<i64: 1, 256>}, {pipeline_mode = #tpu.pipeline_mode<synchronous>, transform_indices = @transform_5, window_bounds = array<i64: 256, 128>}, {pipeline_mode = #tpu.pipeline_mode<synchronous>, transform_indices = @transform_6, window_bounds = array<i64: 1, 128>}, {transform_indices = @transform_7, window_bounds = array<i64: 16, 128>}]} {
    %c0 = arith.constant 0 : index
    %c0_0 = arith.constant 0 : index
    %0 = vector.load %arg1[%c0, %c0_0] : memref<16x64xf32, #tpu.memory_space<vmem>>, vector<16x64xf32>
    %1 = arith.truncf %0 : vector<16x64xf32> to vector<16x64xbf16>
    %c0_1 = arith.constant 0 : index
    %c0_2 = arith.constant 0 : index
    %2 = vector.load %arg2[%c0_1, %c0_2] : memref<64x128xbf16, #tpu.memory_space<vmem>>, vector<64x128xbf16>
    %cst = arith.constant dense<0.000000e+00> : vector<16x128xf32>
    %3 = tpu.matmul %1, %2, %cst {dimension_numbers = #tpu.dot_dimension_numbers<[1], [0], [0], [1], [0, 0, 1, 1], [], []>} : vector<16x64xbf16>, vector<64x128xbf16>, vector<16x128xf32> -> vector<16x128xf32>
    %c0_3 = arith.constant 0 : index
    %c0_4 = arith.constant 0 : index
    %4 = vector.load %arg3[%c0_3, %c0_4] : memref<1x128xf32, #tpu.memory_space<vmem>>, vector<1x128xf32>
    %5 = vector.broadcast %4 : vector<1x128xf32> to vector<16x128xf32>
    %6 = arith.addf %3, %5 : vector<16x128xf32>
    %cst_5 = arith.constant 0.000000e+00 : f32
    %7 = vector.broadcast %cst_5 : f32 to vector<16x128xf32>
    %8 = arith.maximumf %6, %7 : vector<16x128xf32>
    %9 = arith.truncf %8 : vector<16x128xf32> to vector<16x128xbf16>
    %c0_6 = arith.constant 0 : index
    %c0_7 = arith.constant 0 : index
    %10 = vector.load %arg4[%c0_6, %c0_7] : memref<128x256xbf16, #tpu.memory_space<vmem>>, vector<128x256xbf16>
    %cst_8 = arith.constant dense<0.000000e+00> : vector<16x256xf32>
    %11 = tpu.matmul %9, %10, %cst_8 {dimension_numbers = #tpu.dot_dimension_numbers<[1], [0], [0], [1], [0, 0, 1, 1], [], []>} : vector<16x128xbf16>, vector<128x256xbf16>, vector<16x256xf32> -> vector<16x256xf32>
    %c0_9 = arith.constant 0 : index
    %c0_10 = arith.constant 0 : index
    %12 = vector.load %arg5[%c0_9, %c0_10] : memref<1x256xf32, #tpu.memory_space<vmem>>, vector<1x256xf32>
    %13 = vector.broadcast %12 : vector<1x256xf32> to vector<16x256xf32>
    %14 = arith.addf %11, %13 : vector<16x256xf32>
    %cst_11 = arith.constant 0.000000e+00 : f32
    %15 = vector.broadcast %cst_11 : f32 to vector<16x256xf32>
    %16 = arith.maximumf %14, %15 : vector<16x256xf32>
    %17 = arith.truncf %16 : vector<16x256xf32> to vector<16x256xbf16>
    %c0_12 = arith.constant 0 : index
    %c0_13 = arith.constant 0 : index
    %18 = vector.load %arg6[%c0_12, %c0_13] : memref<256x128xbf16, #tpu.memory_space<vmem>>, vector<256x128xbf16>
    %cst_14 = arith.constant dense<0.000000e+00> : vector<16x128xf32>
    %19 = tpu.matmul %17, %18, %cst_14 {dimension_numbers = #tpu.dot_dimension_numbers<[1], [0], [0], [1], [0, 0, 1, 1], [], []>} : vector<16x256xbf16>, vector<256x128xbf16>, vector<16x128xf32> -> vector<16x128xf32>
    %c0_15 = arith.constant 0 : index
    %c0_16 = arith.constant 0 : index
    %20 = vector.load %arg7[%c0_15, %c0_16] : memref<1x128xf32, #tpu.memory_space<vmem>>, vector<1x128xf32>
    %21 = vector.broadcast %20 : vector<1x128xf32> to vector<16x128xf32>
    %22 = arith.addf %19, %21 : vector<16x128xf32>
    %cst_17 = arith.constant dense<0.000000e+00> : vector<16xf32>
    %23 = vector.multi_reduction <add>, %22, %cst_17 [1] : vector<16x128xf32> to vector<16xf32>
    %24 = vector.shape_cast %23 : vector<16xf32> to vector<16x1xf32>
    %25 = vector.extract_strided_slice %22 {offsets = [0, 8], sizes = [16, 1], strides = [1, 1]} : vector<16x128xf32> to vector<16x1xf32>
    %26 = arith.subf %24, %25 : vector<16x1xf32>
    %cst_18 = arith.constant 1.250000e-01 : f32
    %27 = vector.broadcast %cst_18 : f32 to vector<16x1xf32>
    %28 = arith.mulf %26, %27 : vector<16x1xf32>
    %29 = arith.subf %25, %28 : vector<16x1xf32>
    %30 = vector.broadcast %29 : vector<16x1xf32> to vector<16x128xf32>
    %31 = arith.addf %22, %30 : vector<16x128xf32>
    %c0_19 = arith.constant 0 : index
    %c0_20 = arith.constant 0 : index
    %32 = vector.load %arg8[%c0_19, %c0_20] : memref<16x128xf32, #tpu.memory_space<vmem>>, vector<16x128xf32>
    tpu.vector_store %arg8[%c0_19, %c0_20], %31 {strides = array<i32>} : memref<16x128xf32, #tpu.memory_space<vmem>>, vector<16x128xf32>,
    return
  }
  func.func @transform_0(%arg0: i32) -> (i32, i32) {
    %c0_i32 = arith.constant 0 : i32
    %c0_i32_0 = arith.constant 0 : i32
    return %arg0, %c0_i32 : i32, i32
  }
  func.func @transform_1(%arg0: i32) -> (i32, i32) {
    %c0_i32 = arith.constant 0 : i32
    %c0_i32_0 = arith.constant 0 : i32
    %c0_i32_1 = arith.constant 0 : i32
    return %c0_i32, %c0_i32_0 : i32, i32
  }
  func.func @transform_2(%arg0: i32) -> (i32, i32) {
    %c0_i32 = arith.constant 0 : i32
    %c0_i32_0 = arith.constant 0 : i32
    %c0_i32_1 = arith.constant 0 : i32
    return %c0_i32, %c0_i32_0 : i32, i32
  }
  func.func @transform_3(%arg0: i32) -> (i32, i32) {
    %c0_i32 = arith.constant 0 : i32
    %c0_i32_0 = arith.constant 0 : i32
    %c0_i32_1 = arith.constant 0 : i32
    return %c0_i32, %c0_i32_0 : i32, i32
  }
  func.func @transform_4(%arg0: i32) -> (i32, i32) {
    %c0_i32 = arith.constant 0 : i32
    %c0_i32_0 = arith.constant 0 : i32
    %c0_i32_1 = arith.constant 0 : i32
    return %c0_i32, %c0_i32_0 : i32, i32
  }
  func.func @transform_5(%arg0: i32) -> (i32, i32) {
    %c0_i32 = arith.constant 0 : i32
    %c0_i32_0 = arith.constant 0 : i32
    %c0_i32_1 = arith.constant 0 : i32
    return %c0_i32, %c0_i32_0 : i32, i32
  }
  func.func @transform_6(%arg0: i32) -> (i32, i32) {
    %c0_i32 = arith.constant 0 : i32
    %c0_i32_0 = arith.constant 0 : i32
    %c0_i32_1 = arith.constant 0 : i32
    return %c0_i32, %c0_i32_0 : i32, i32
  }
  func.func @transform_7(%arg0: i32) -> (i32, i32) {
    %c0_i32 = arith.constant 0 : i32
    %c0_i32_0 = arith.constant 0 : i32
    return %arg0, %c0_i32 : i32, i32
  }
}

</mosaic_0001>

<llo_original>
// kernel: tpu_custom_call.1
$region0: #{tpu_custom_call.1}
  #allocation0 [shape = 'u32[]', space=smem, size = 0x4, offset = 0x4, fixed_abs, tag = 'smem constant byte address 0x4 - core index']
  #allocation1 [shape = 'u32[144,128]{1,0:T(1,128)}', space=vmem, size = 0x12000, scoped, tag = 'internal scratch']
  %s0 = inlined_call_operand.hbm [shape: f32[32,64], index: 0, kind: input, shape index: {}]
  %s1 = inlined_call_operand.hbm [shape: bf16[64,128], index: 1, kind: input, shape index: {}]
  %s2 = inlined_call_operand.vmem [shape: f32[1,128], index: 2, kind: input, shape index: {}]
  %s3 = inlined_call_operand.hbm [shape: bf16[128,256], index: 3, kind: input, shape index: {}]
  %s4 = inlined_call_operand.vmem [shape: f32[1,256], index: 4, kind: input, shape index: {}]
  %s5 = inlined_call_operand.hbm [shape: bf16[256,128], index: 5, kind: input, shape index: {}]
  %s6 = inlined_call_operand.vmem [shape: f32[1,128], index: 6, kind: input, shape index: {}]
  %s7 = inlined_call_operand.hbm [shape: f32[32,128], index: 7, kind: output, shape index: {}]
  %s8 = sld [smem:[#allocation0]]
  $region77: #{tpu_custom_call.1} parent=0
    _
  %s10 = ssub.s32 1, %s8
  %s11 = scalar_select 0, %s10, %s8
  $region1: #{tpu_custom_call.1} parent=0
    #allocation2 [shape = 'u8[16384]{0}', space=vmem, size = 0x4000, scoped, tag = 'input window, operand 0']
    #allocation3 [shape = 's32[2]{0}', space=sflag, size = 0x8, scoped, tag = 'scoped memory for tpu_custom_call.1']
    #allocation4 [shape = 's32[2]{0}', space=sflag, size = 0x8, scoped, tag = 'scoped memory for tpu_custom_call.1']
    #allocation5 [shape = 'u8[16384]{0}', space=vmem, size = 0x4000, scoped, tag = 'input window, operand 1, single buffered']
    #allocation6 [shape = 's32[1]{0}', space=sflag, size = 0x4, scoped, tag = 'scoped memory for tpu_custom_call.1']
    #allocation7 [shape = 'u8[65536]{0}', space=vmem, size = 0x10000, scoped, tag = 'input window, operand 3, single buffered']
    #allocation8 [shape = 'u8[65536]{0}', space=vmem, size = 0x10000, scoped, tag = 'input window, operand 5, single buffered']
    #allocation9 [shape = 's32[1]{0}', space=sflag, size = 0x4, scoped, tag = 'scoped memory for tpu_custom_call.1']
    #allocation10 [shape = 'u8[16384]{0}', space=vmem, size = 0x4000, scoped, tag = 'output window, operand 0']
    %12 = vsyncpa [#allocation3], 0
    %s13 = scalar_lea.sflag [#allocation3], 1
    %14 = vsyncpa %s13, 0
    %15 = vsyncpa [#allocation6], 0
    %16 = vsyncpa [#allocation9], 0
    %17 = vsyncpa [#allocation4], 0
    %s18 = scalar_lea.sflag [#allocation4], 1
    %19 = vsyncpa %s18, 0
    loop: start=0, step=1, limit=4
    $region2: #{tpu_custom_call.1} parent=1 // loop_pre_header
      _
    $region3: #{tpu_custom_call.1} parent=1 // loop_header
      %s21 = sphi 0, %s25
      %p22 = scmp.ge.s32.totalorder %s21, 4
      %s31 = sphi 0, %s33
      %s34 = sphi 0, %s31
      %s35 = sphi 0, %s34
      %s51 = sphi 0, %s35
      %s55 = sphi 0, %s55
      %s57 = sphi 0, %s55
      %s58 = sphi 0, %s57
      %s72 = sphi 0, %s58
      %s76 = sphi 0, %s76
      %s78 = sphi 0, %s76
      %s79 = sphi 0, %s78
      %s93 = sphi 0, %s79
      %s97 = sphi 0, %s97
      %s99 = sphi 0, %s97
      %s100 = sphi 0, %s99
      %s114 = sphi 0, %s100
      %s118 = sphi 0, %s118
      %s120 = sphi 0, %s118
      %s121 = sphi 0, %s120
      %s135 = sphi 0, %s121
      %s139 = sphi 0, %s139
      %s141 = sphi 0, %s139
      %s142 = sphi 0, %s141
      %s156 = sphi 0, %s142
      %s160 = sphi 0, %s160
      %s162 = sphi 0, %s160
      %s163 = sphi 0, %s162
      %s177 = sphi 0, %s163
      %s183 = sphi 0, %s185
      %s186 = sphi 0, %s183
      %s187 = sphi 0, %s186
      %s203 = sphi 0, %s187
    $region4: #{tpu_custom_call.1} parent=1 // loop_header_branch
      %24 = sbr.rel (%p22) target = $region8
    $region5: #{tpu_custom_call.1} parent=1 // loop_body
      %s26 = ssub.s32 %s21, 1
      %s27 = ssub.s32 %s21, 2
      %s28 = sadd.s32 %s21, 1
      %s29 = ssub.s32 %s21, %s28
      %p30 = scmp.eq.s32.totalorder %s29, 0
      %s32 = sadd.s32 %s31, 1
      %s33 = scalar_select %p30, %s31, %s32
      %p36 = pneg %p30
      %p37 = scmp.eq.s32.totalorder %s21, 1
      %p38 = por %p36, %p37
      %p39 = scmp.ne.s32.totalorder %s31, %s34
      %p40 = scmp.eq.s32.totalorder %s21, 0
      %p41 = por %p39, %p40
      %p42 = scmp.ne.s32.totalorder %s31, %s34
      %p43 = scmp.eq.s32.totalorder %s26, 1
      %p44 = por %p42, %p43
      %p45 = scmp.ne.s32.totalorder %s34, %s35
      %p46 = scmp.eq.s32.totalorder %s26, 0
      %p47 = por %p45, %p46
      %p48 = scmp.ne.s32.totalorder %s34, %s35
      %p49 = scmp.eq.s32.totalorder %s27, 1
      %p50 = por %p48, %p49
      %p52 = scmp.ne.s32.totalorder %s35, %s51
      %p53 = scmp.eq.s32.totalorder %s27, 0
      %p54 = por %p52, %p53
      %s56 = sadd.s32 %s55, 1
      %p59 = scmp.eq.s32.totalorder %s21, 1
      %p60 = scmp.ne.s32.totalorder %s55, %s57
      %p61 = scmp.eq.s32.totalorder %s21, 0
      %p62 = por %p60, %p61
      %p63 = scmp.ne.s32.totalorder %s55, %s57
      %p64 = scmp.eq.s32.totalorder %s26, 1
      %p65 = por %p63, %p64
      %p66 = scmp.ne.s32.totalorder %s57, %s58
      %p67 = scmp.eq.s32.totalorder %s26, 0
      %p68 = por %p66, %p67
      %p69 = scmp.ne.s32.totalorder %s57, %s58
      %p70 = scmp.eq.s32.totalorder %s27, 1
      %p71 = por %p69, %p70
      %p73 = scmp.ne.s32.totalorder %s58, %s72
      %p74 = scmp.eq.s32.totalorder %s27, 0
      %p75 = por %p73, %p74
      %s77 = sadd.s32 %s76, 1
      %p80 = scmp.eq.s32.totalorder %s21, 1
      %p81 = scmp.ne.s32.totalorder %s76, %s78
      %p82 = scmp.eq.s32.totalorder %s21, 0
      %p83 = por %p81, %p82
      %p84 = scmp.ne.s32.totalorder %s76, %s78
      %p85 = scmp.eq.s32.totalorder %s26, 1
      %p86 = por %p84, %p85
      %p87 = scmp.ne.s32.totalorder %s78, %s79
      %p88 = scmp.eq.s32.totalorder %s26, 0
      %p89 = por %p87, %p88
      %p90 = scmp.ne.s32.totalorder %s78, %s79
      %p91 = scmp.eq.s32.totalorder %s27, 1
      %p92 = por %p90, %p91
      %p94 = scmp.ne.s32.totalorder %s79, %s93
      %p95 = scmp.eq.s32.totalorder %s27, 0
      %p96 = por %p94, %p95
      %s98 = sadd.s32 %s97, 1
      %p101 = scmp.eq.s32.totalorder %s21, 1
      %p102 = scmp.ne.s32.totalorder %s97, %s99
      %p103 = scmp.eq.s32.totalorder %s21, 0
      %p104 = por %p102, %p103
      %p105 = scmp.ne.s32.totalorder %s97, %s99
      %p106 = scmp.eq.s32.totalorder %s26, 1
      %p107 = por %p105, %p106
      %p108 = scmp.ne.s32.totalorder %s99, %s100
      %p109 = scmp.eq.s32.totalorder %s26, 0
      %p110 = por %p108, %p109
      %p111 = scmp.ne.s32.totalorder %s99, %s100
      %p112 = scmp.eq.s32.totalorder %s27, 1
      %p113 = por %p111, %p112
      %p115 = scmp.ne.s32.totalorder %s100, %s114
      %p116 = scmp.eq.s32.totalorder %s27, 0
      %p117 = por %p115, %p116
      %s119 = sadd.s32 %s118, 1
      %p122 = scmp.eq.s32.totalorder %s21, 1
      %p123 = scmp.ne.s32.totalorder %s118, %s120
      %p124 = scmp.eq.s32.totalorder %s21, 0
      %p125 = por %p123, %p124
      %p126 = scmp.ne.s32.totalorder %s118, %s120
      %p127 = scmp.eq.s32.totalorder %s26, 1
      %p128 = por %p126, %p127
      %p129 = scmp.ne.s32.totalorder %s120, %s121
      %p130 = scmp.eq.s32.totalorder %s26, 0
      %p131 = por %p129, %p130
      %p132 = scmp.ne.s32.totalorder %s120, %s121
      %p133 = scmp.eq.s32.totalorder %s27, 1
      %p134 = por %p132, %p133
      %p136 = scmp.ne.s32.totalorder %s121, %s135
      %p137 = scmp.eq.s32.totalorder %s27, 0
      %p138 = por %p136, %p137
      %s140 = sadd.s32 %s139, 1
      %p143 = scmp.eq.s32.totalorder %s21, 1
      %p144 = scmp.ne.s32.totalorder %s139, %s141
      %p145 = scmp.eq.s32.totalorder %s21, 0
      %p146 = por %p144, %p145
      %p147 = scmp.ne.s32.totalorder %s139, %s141
      %p148 = scmp.eq.s32.totalorder %s26, 1
      %p149 = por %p147, %p148
      %p150 = scmp.ne.s32.totalorder %s141, %s142
      %p151 = scmp.eq.s32.totalorder %s26, 0
      %p152 = por %p150, %p151
      %p153 = scmp.ne.s32.totalorder %s141, %s142
      %p154 = scmp.eq.s32.totalorder %s27, 1
      %p155 = por %p153, %p154
      %p157 = scmp.ne.s32.totalorder %s142, %s156
      %p158 = scmp.eq.s32.totalorder %s27, 0
      %p159 = por %p157, %p158
      %s161 = sadd.s32 %s160, 1
      %p164 = scmp.eq.s32.totalorder %s21, 1
      %p165 = scmp.ne.s32.totalorder %s160, %s162
      %p166 = scmp.eq.s32.totalorder %s21, 0
      %p167 = por %p165, %p166
      %p168 = scmp.ne.s32.totalorder %s160, %s162
      %p169 = scmp.eq.s32.totalorder %s26, 1
      %p170 = por %p168, %p169
      %p171 = scmp.ne.s32.totalorder %s162, %s163
      %p172 = scmp.eq.s32.totalorder %s26, 0
      %p173 = por %p171, %p172
      %p174 = scmp.ne.s32.totalorder %s162, %s163
      %p175 = scmp.eq.s32.totalorder %s27, 1
      %p176 = por %p174, %p175
      %p178 = scmp.ne.s32.totalorder %s163, %s177
      %p179 = scmp.eq.s32.totalorder %s27, 0
      %p180 = por %p178, %p179
      %s181 = ssub.s32 %s21, %s28
      %p182 = scmp.eq.s32.totalorder %s181, 0
      %s184 = sadd.s32 %s183, 1
      %s185 = scalar_select %p182, %s183, %s184
      %p188 = pneg %p182
      %p189 = scmp.eq.s32.totalorder %s21, 1
      %p190 = por %p188, %p189
      %p191 = scmp.ne.s32.totalorder %s183, %s186
      %p192 = scmp.eq.s32.totalorder %s21, 0
      %p193 = por %p191, %p192
      %p194 = scmp.ne.s32.totalorder %s183, %s186
      %p195 = scmp.eq.s32.totalorder %s26, 1
      %p196 = por %p194, %p195
      %p197 = scmp.ne.s32.totalorder %s186, %s187
      %p198 = scmp.eq.s32.totalorder %s26, 0
      %p199 = por %p197, %p198
      %p200 = scmp.ne.s32.totalorder %s186, %s187
      %p201 = scmp.eq.s32.totalorder %s27, 1
      %p202 = por %p200, %p201
      %p204 = scmp.ne.s32.totalorder %s187, %s203
      %p205 = scmp.eq.s32.totalorder %s27, 0
      %p206 = por %p204, %p205
      %p207 = scmp.le.s32.totalorder 1, %s21
      %p208 = scmp.lt.s32.totalorder %s21, 3
      %p209 = pnand %p207, %p208
      %p210 = pneg %p209
      // Predicated region
      $region9: #{tpu_custom_call.1} parent=5 // pred_check
        _
      $region10: #{tpu_custom_call.1} parent=5 // pred_check_branch
        %212 = sbr.rel (%p209) target = $region12
      $region11: #{tpu_custom_call.1} parent=5 // pred_region
        %s213 = ssub.s32 %s21, 1
        // Predicated region
        $region13: #{tpu_custom_call.1} parent=11 // pred_check
          %p214 = pneg %p68
        $region14: #{tpu_custom_call.1} parent=11 // pred_check_branch
          %216 = sbr.rel (%p214) target = $region16
        $region15: #{tpu_custom_call.1} parent=11 // pred_region
          %s218 = ssub.s32 512, 512
          %219 = vsyncadd [#allocation6], %s218
          %s220 = sshll.u32 [#allocation5], 4
          %s221 = int_to_ptr.vmem [resolvable:$true] %s220
          %226 = dma.hbm_to_vmem [thread:$0]  %s1, 512, %s221, [#allocation6], 64, 64, 4
        $region16: #{tpu_custom_call.1} parent=11 // pred_fallthru
          _
        // Predicated region
        $region17: #{tpu_custom_call.1} parent=11 // pred_check
          %p227 = pneg %p89
        $region18: #{tpu_custom_call.1} parent=11 // pred_check_branch
          %229 = sbr.rel (%p227) target = $region20
        $region19: #{tpu_custom_call.1} parent=11 // pred_region
          _
        $region20: #{tpu_custom_call.1} parent=11 // pred_fallthru
          _
        // Predicated region
        $region21: #{tpu_custom_call.1} parent=11 // pred_check
          %p230 = pneg %p110
        $region22: #{tpu_custom_call.1} parent=11 // pred_check_branch
          %232 = sbr.rel (%p230) target = $region24
        $region23: #{tpu_custom_call.1} parent=11 // pred_region
          %s234 = ssub.s32 2048, 2048
          %235 = vsyncadd [#allocation6], %s234
          %s236 = sshll.u32 [#allocation7], 4
          %s237 = int_to_ptr.vmem [resolvable:$true] %s236
          %242 = dma.hbm_to_vmem [thread:$0]  %s3, 2048, %s237, [#allocation6], 128, 128, 8
        $region24: #{tpu_custom_call.1} parent=11 // pred_fallthru
          _
        // Predicated region
        $region25: #{tpu_custom_call.1} parent=11 // pred_check
          %p243 = pneg %p131
        $region26: #{tpu_custom_call.1} parent=11 // pred_check_branch
          %245 = sbr.rel (%p243) target = $region28
        $region27: #{tpu_custom_call.1} parent=11 // pred_region
          _
        $region28: #{tpu_custom_call.1} parent=11 // pred_fallthru
          _
        // Predicated region
        $region29: #{tpu_custom_call.1} parent=11 // pred_check
          %p246 = pneg %p152
        $region30: #{tpu_custom_call.1} parent=11 // pred_check_branch
          %248 = sbr.rel (%p246) target = $region32
        $region31: #{tpu_custom_call.1} parent=11 // pred_region
          %s250 = ssub.s32 2048, 2048
          %251 = vsyncadd [#allocation9], %s250
          %s252 = sshll.u32 [#allocation8], 4
          %s253 = int_to_ptr.vmem [resolvable:$true] %s252
          %258 = dma.hbm_to_vmem [thread:$0]  %s5, 2048, %s253, [#allocation9], 64, 64, 4
        $region32: #{tpu_custom_call.1} parent=11 // pred_fallthru
          _
        // Predicated region
        $region33: #{tpu_custom_call.1} parent=11 // pred_check
          %p259 = pneg %p173
        $region34: #{tpu_custom_call.1} parent=11 // pred_check_branch
          %261 = sbr.rel (%p259) target = $region36
        $region35: #{tpu_custom_call.1} parent=11 // pred_region
          _
        $region36: #{tpu_custom_call.1} parent=11 // pred_fallthru
          _
      $region12: #{tpu_custom_call.1} parent=5 // pred_fallthru
        _
      %p262 = scmp.lt.s32.totalorder %s21, 2
      // Predicated region
      $region37: #{tpu_custom_call.1} parent=5 // pred_check
        %p263 = pneg %p262
      $region38: #{tpu_custom_call.1} parent=5 // pred_check_branch
        %265 = sbr.rel (%p263) target = $region40
      $region39: #{tpu_custom_call.1} parent=5 // pred_region
        // Predicated region
        $region41: #{tpu_custom_call.1} parent=39 // pred_check
          %p266 = pneg %p41
        $region42: #{tpu_custom_call.1} parent=39 // pred_check_branch
          %268 = sbr.rel (%p266) target = $region44
        $region43: #{tpu_custom_call.1} parent=39 // pred_region
          %s269 = sand.u32 %s31, 1
          %s270 = scalar_lea.sflag [#allocation3], %s269
          %s271 = sand.u32 %s31, 1
          %s272 = smul.addr %s271, 16
          %s273 = scalar_lea.vmem [#allocation2], %s272
          %s274 = smul.u32 2, %s21
          %s276 = ssub.s32 256, 256
          %277 = vsyncadd %s270, %s276
          %s278 = smul.addr %s274, 128
          %s279 = scalar_lea.hbm %s0, %s278
          %s280 = sshll.u32 %s273, 4
          %s281 = int_to_ptr.vmem [resolvable:$true] %s280
          %286 = dma.hbm_to_vmem [thread:$0]  %s279, 256, %s281, %s270, 128, 128, 8
        $region44: #{tpu_custom_call.1} parent=39 // pred_fallthru
          _
      $region40: #{tpu_custom_call.1} parent=5 // pred_fallthru
        _
      %p287 = scmp.le.s32.totalorder 1, %s21
      %p288 = scmp.lt.s32.totalorder %s21, 3
      %p289 = pnand %p287, %p288
      %p290 = pneg %p289
      // Predicated region
      $region45: #{tpu_custom_call.1} parent=5 // pred_check
        _
      $region46: #{tpu_custom_call.1} parent=5 // pred_check_branch
        %292 = sbr.rel (%p289) target = $region48
      $region47: #{tpu_custom_call.1} parent=5 // pred_region
        %s293 = ssub.s32 %s21, 1
        %s294 = sand.u32 %s34, 1
        %s295 = scalar_lea.sflag [#allocation3], %s294
        %s296 = sand.u32 %s34, 1
        %s297 = smul.addr %s296, 16
        %s298 = scalar_lea.vmem [#allocation2], %s297
        // Predicated region
        $region49: #{tpu_custom_call.1} parent=47 // pred_check
          %p299 = pneg %p47
        $region50: #{tpu_custom_call.1} parent=47 // pred_check_branch
          %301 = sbr.rel (%p299) target = $region52
        $region51: #{tpu_custom_call.1} parent=47 // pred_region
          %302 = dma.done %s295, 256
        $region52: #{tpu_custom_call.1} parent=47 // pred_fallthru
          _
        // Predicated region
        $region53: #{tpu_custom_call.1} parent=47 // pred_check
          %p303 = pneg %p68
        $region54: #{tpu_custom_call.1} parent=47 // pred_check_branch
          %305 = sbr.rel (%p303) target = $region56
        $region55: #{tpu_custom_call.1} parent=47 // pred_region
          %306 = dma.done [#allocation6], 512
        $region56: #{tpu_custom_call.1} parent=47 // pred_fallthru
          _
        // Predicated region
        $region57: #{tpu_custom_call.1} parent=47 // pred_check
          %p307 = pneg %p110
        $region58: #{tpu_custom_call.1} parent=47 // pred_check_branch
          %309 = sbr.rel (%p307) target = $region60
        $region59: #{tpu_custom_call.1} parent=47 // pred_region
          %310 = dma.done [#allocation6], 2048
        $region60: #{tpu_custom_call.1} parent=47 // pred_fallthru
          _
        // Predicated region
        $region61: #{tpu_custom_call.1} parent=47 // pred_check
          %p311 = pneg %p152
        $region62: #{tpu_custom_call.1} parent=47 // pred_check_branch
          %313 = sbr.rel (%p311) target = $region64
        $region63: #{tpu_custom_call.1} parent=47 // pred_region
          %314 = dma.done [#allocation9], 2048
        $region64: #{tpu_custom_call.1} parent=47 // pred_fallthru
          _
        %s315 = sand.u32 %s34, 1
        %s316 = scalar_lea.sflag [#allocation3], %s315
        %s317 = sand.u32 %s34, 1
        %s318 = smul.addr %s317, 16
        %s319 = scalar_lea.vmem [#allocation2], %s318
        %p320 = pneg %p47
        %p321 = pneg %p44
        %p322 = pneg %p68
        %p323 = pneg %p65
        %p324 = pneg %p89
        %p325 = pneg %p86
        %p326 = pneg %p110
        %p327 = pneg %p107
        %p328 = pneg %p131
        %p329 = pneg %p128
        %p330 = pneg %p152
        %p331 = pneg %p149
        %p332 = pneg %p173
        %p333 = pneg %p170
        %p334 = pneg %p199
        %p335 = pneg %p196
        %s336 = sand.u32 %s186, 1
        %s337 = scalar_lea.sflag [#allocation4], %s336
        %s338 = sand.u32 %s186, 1
        %s339 = smul.addr %s338, 16
        %s340 = scalar_lea.vmem [#allocation10], %s339
        %s341 = smul.u32 2, %s26
        %s342 = smul.u32 2, %s26
        %v344 = vld [vmem:[%s298] sm:$0xff]
        %v345 = vld [vmem:[%s298 + $0x8] sm:$0xff]
        %v346 = vpack.c.bf16 %v345, %v344
        %v347 = vld [vmem:[#allocation5] sm:$0xf]
        %v348 = vld [vmem:[#allocation5 + $0x4] sm:$0xf]
        %v349 = vld [vmem:[#allocation5 + $0x8] sm:$0xf]
        %v350 = vld [vmem:[#allocation5 + $0xc] sm:$0xf]
        %v351 = vld [vmem:[#allocation5 + $0x10] sm:$0xf]
        %v352 = vld [vmem:[#allocation5 + $0x14] sm:$0xf]
        %v353 = vld [vmem:[#allocation5 + $0x18] sm:$0xf]
        %v354 = vld [vmem:[#allocation5 + $0x1c] sm:$0xf]
        %v355 = vld [vmem:[%s2] sm:$0x1]
        %v357 = vlaneseq
        %v358 = vshrl.u32 %v357, 7
        %v359 = vsub.s32 0, %v358
        %v360 = vrot.slane %v355, %v359
        %v370 = vunpack.c.l.b16 %v347
        %v371 = vunpack.c.l.b16 %v348
        %v372 = vunpack.c.l.b16 %v349
        %v373 = vunpack.c.l.b16 %v350
        %v374 = vunpack.c.l.b16 %v351
        %v375 = vunpack.c.l.b16 %v352
        %v376 = vunpack.c.l.b16 %v353
        %v377 = vunpack.c.l.b16 %v354
        %v378 = vpack.c.b16 %v371, %v370
        %v379 = vpack.c.b16 %v373, %v372
        %v380 = vpack.c.b16 %v375, %v374
        %v381 = vpack.c.b16 %v377, %v376
        %vm386 = vcmask 523264
        %v388 = vsel %vm386, %v346, 0
        %390 = vmatprep.subr.bf16.mxu0 0
        %391 = vmatpush1.bf16.msra.mxu0 %v378
        %392 = vmatprep.subr.bf16.mxu0 0
        %393 = vmatpush1.bf16.msra.mxu0 %v379
        %394 = vmatprep.subr.bf16.mxu0 0
        %395 = vmatpush1.bf16.msra.mxu0 %v380
        %396 = vmatprep.subr.bf16.mxu0 0
        %397 = vmatpush1.bf16.msra.mxu0 %v381
        %398 = vmatprep.subr.bf16.mxu0 0
        %399 = vmatpush1.bf16.msra.mxu0 0
        %400 = vmatprep.subr.bf16.mxu0 0
        %401 = vmatpush1.bf16.msra.mxu0 0
        %402 = vmatprep.subr.bf16.mxu0 0
        %403 = vmatpush1.bf16.msra.mxu0 0
        %404 = vmatprep.subr.bf16.mxu0 0
        %405 = vmatpush1.bf16.msra.mxu0 0
        %406 = vmatprep.subr.bf16.mxu0 0
        %407 = vmatpush1.bf16.msra.mxu0 0
        %408 = vmatprep.subr.bf16.mxu0 0
        %409 = vmatpush1.bf16.msra.mxu0 0
        %410 = vmatprep.subr.bf16.mxu0 0
        %411 = vmatpush1.bf16.msra.mxu0 0
        %412 = vmatprep.subr.bf16.mxu0 0
        %413 = vmatpush1.bf16.msra.mxu0 0
        %414 = vmatprep.subr.bf16.mxu0 0
        %415 = vmatpush1.bf16.msra.mxu0 0
        %416 = vmatprep.subr.bf16.mxu0 0
        %417 = vmatpush1.bf16.msra.mxu0 0
        %418 = vmatprep.subr.bf16.mxu0 0
        %419 = vmatpush1.bf16.msra.mxu0 0
        %420 = vmatprep.subr.bf16.mxu0 0
        %421 = vmatpush1.bf16.msra.mxu0 0
        %422 = vmatprep.mubr.bf16.mxu0 0
        %423 = vmatmul.mubr.bf16.gmra.mrb[0].mxu0 %v388
        %v424 = vpop.f32.mrb[0].mxu0
        %v425 = vadd.f32 %v360, %v424
        %v426 = vpop.f32.mrb[0].mxu0
        %v427 = vpop.f32.mrb[0].mxu0
        %v428 = vadd.f32 %v360, %v427
        %v429 = vpop.f32.mrb[0].mxu0
        %430 = vdwg.mxu0
        %v431 = vmax.f32 %v425, 0.0
        %v432 = vmax.f32 %v428, 0.0
        %v433 = vpack.c.bf16 %v432, %v431
        %v434 = vld [vmem:[#allocation7] sm:$0xff]
        %v435 = vld [vmem:[#allocation7 + $0x8] sm:$0xff]
        %v436 = vld [vmem:[#allocation7 + $0x10] sm:$0xff]
        %v437 = vld [vmem:[#allocation7 + $0x18] sm:$0xff]
        %v438 = vld [vmem:[#allocation7 + $0x20] sm:$0xff]
        %v439 = vld [vmem:[#allocation7 + $0x28] sm:$0xff]
        %v440 = vld [vmem:[#allocation7 + $0x30] sm:$0xff]
        %v441 = vld [vmem:[#allocation7 + $0x38] sm:$0xff]
        %v442 = vld [vmem:[#allocation7 + $0x40] sm:$0xff]
        %v443 = vld [vmem:[#allocation7 + $0x48] sm:$0xff]
        %v444 = vld [vmem:[#allocation7 + $0x50] sm:$0xff]
        %v445 = vld [vmem:[#allocation7 + $0x58] sm:$0xff]
        %v446 = vld [vmem:[#allocation7 + $0x60] sm:$0xff]
        %v447 = vld [vmem:[#allocation7 + $0x68] sm:$0xff]
        %v448 = vld [vmem:[#allocation7 + $0x70] sm:$0xff]
        %v449 = vld [vmem:[#allocation7 + $0x78] sm:$0xff]
        %v450 = vld [vmem:[%s4] sm:$0x3]
        %v452 = vlaneseq
        %v453 = vshrl.u32 %v452, 7
        %v454 = vsub.s32 0, %v453
        %v455 = vrot.slane %v450, %v454
        %v456 = vlaneseq
        %v457 = vshrl.u32 %v456, 7
        %v458 = vsub.s32 1, %v457
        %v459 = vrot.slane %v450, %v458
        %v478 = vunpack.c.l.b16 %v434
        %v479 = vunpack.c.h.b16 %v434
        %v480 = vunpack.c.l.b16 %v435
        %v481 = vunpack.c.h.b16 %v435
        %v482 = vunpack.c.l.b16 %v436
        %v483 = vunpack.c.h.b16 %v436
        %v484 = vunpack.c.l.b16 %v437
        %v485 = vunpack.c.h.b16 %v437
        %v486 = vunpack.c.l.b16 %v438
        %v487 = vunpack.c.h.b16 %v438
        %v488 = vunpack.c.l.b16 %v439
        %v489 = vunpack.c.h.b16 %v439
        %v490 = vunpack.c.l.b16 %v440
        %v491 = vunpack.c.h.b16 %v440
        %v492 = vunpack.c.l.b16 %v441
        %v493 = vunpack.c.h.b16 %v441
        %v494 = vunpack.c.l.b16 %v442
        %v495 = vunpack.c.h.b16 %v442
        %v496 = vunpack.c.l.b16 %v443
        %v497 = vunpack.c.h.b16 %v443
        %v498 = vunpack.c.l.b16 %v444
        %v499 = vunpack.c.h.b16 %v444
        %v500 = vunpack.c.l.b16 %v445
        %v501 = vunpack.c.h.b16 %v445
        %v502 = vunpack.c.l.b16 %v446
        %v503 = vunpack.c.h.b16 %v446
        %v504 = vunpack.c.l.b16 %v447
        %v505 = vunpack.c.h.b16 %v447
        %v506 = vunpack.c.l.b16 %v448
        %v507 = vunpack.c.h.b16 %v448
        %v508 = vunpack.c.l.b16 %v449
        %v509 = vunpack.c.h.b16 %v449
        %v510 = vpack.c.b16 %v480, %v478
        %v511 = vpack.c.b16 %v481, %v479
        %v512 = vpack.c.b16 %v484, %v482
        %v513 = vpack.c.b16 %v485, %v483
        %v514 = vpack.c.b16 %v488, %v486
        %v515 = vpack.c.b16 %v489, %v487
        %v516 = vpack.c.b16 %v492, %v490
        %v517 = vpack.c.b16 %v493, %v491
        %v518 = vpack.c.b16 %v496, %v494
        %v519 = vpack.c.b16 %v497, %v495
        %v520 = vpack.c.b16 %v500, %v498
        %v521 = vpack.c.b16 %v501, %v499
        %v522 = vpack.c.b16 %v504, %v502
        %v523 = vpack.c.b16 %v505, %v503
        %v524 = vpack.c.b16 %v508, %v506
        %v525 = vpack.c.b16 %v509, %v507
        %542 = vmatprep.subr.bf16.mxu0 %v511
        %543 = vmatpush1.bf16.msra.mxu0 %v510
        %544 = vmatprep.subr.bf16.mxu0 %v513
        %545 = vmatpush1.bf16.msra.mxu0 %v512
        %546 = vmatprep.subr.bf16.mxu0 %v515
        %547 = vmatpush1.bf16.msra.mxu0 %v514
        %548 = vmatprep.subr.bf16.mxu0 %v517
        %549 = vmatpush1.bf16.msra.mxu0 %v516
        %550 = vmatprep.subr.bf16.mxu0 %v519
        %551 = vmatpush1.bf16.msra.mxu0 %v518
        %552 = vmatprep.subr.bf16.mxu0 %v521
        %553 = vmatpush1.bf16.msra.mxu0 %v520
        %554 = vmatprep.subr.bf16.mxu0 %v523
        %555 = vmatpush1.bf16.msra.mxu0 %v522
        %556 = vmatprep.subr.bf16.mxu0 %v525
        %557 = vmatpush1.bf16.msra.mxu0 %v524
        %558 = vmatprep.subr.bf16.mxu0 0
        %559 = vmatpush1.bf16.msra.mxu0 0
        %560 = vmatprep.subr.bf16.mxu0 0
        %561 = vmatpush1.bf16.msra.mxu0 0
        %562 = vmatprep.subr.bf16.mxu0 0
        %563 = vmatpush1.bf16.msra.mxu0 0
        %564 = vmatprep.subr.bf16.mxu0 0
        %565 = vmatpush1.bf16.msra.mxu0 0
        %566 = vmatprep.subr.bf16.mxu0 0
        %567 = vmatpush1.bf16.msra.mxu0 0
        %568 = vmatprep.subr.bf16.mxu0 0
        %569 = vmatpush1.bf16.msra.mxu0 0
        %570 = vmatprep.subr.bf16.mxu0 0
        %571 = vmatpush1.bf16.msra.mxu0 0
        %572 = vmatprep.subr.bf16.mxu0 0
        %573 = vmatpush1.bf16.msra.mxu0 0
        %574 = vmatprep.mubr.bf16.mxu0 0
        %575 = vmatmul.mubr.bf16.gmra.mrb[0].mxu0 %v433
        %v576 = vpop.f32.mrb[0].mxu0
        %v577 = vadd.f32 %v455, %v576
        %v578 = vpop.f32.mrb[0].mxu0
        %v579 = vadd.f32 %v459, %v578
        %v580 = vpop.f32.mrb[0].mxu0
        %v581 = vadd.f32 %v455, %v580
        %v582 = vpop.f32.mrb[0].mxu0
        %v583 = vadd.f32 %v459, %v582
        %584 = vdwg.mxu0
        %v585 = vmax.f32 %v577, 0.0
        %v586 = vmax.f32 %v579, 0.0
        %v587 = vmax.f32 %v581, 0.0
        %v588 = vmax.f32 %v583, 0.0
        %v589 = vpack.c.bf16 %v587, %v585
        %v590 = vpack.c.bf16 %v588, %v586
        %v591 = vld [vmem:[#allocation8] sm:$0xf]
        %v592 = vld [vmem:[#allocation8 + $0x4] sm:$0xf]
        %v593 = vld [vmem:[#allocation8 + $0x8] sm:$0xf]
        %v594 = vld [vmem:[#allocation8 + $0xc] sm:$0xf]
        %v595 = vld [vmem:[#allocation8 + $0x10] sm:$0xf]
        %v596 = vld [vmem:[#allocation8 + $0x14] sm:$0xf]
        %v597 = vld [vmem:[#allocation8 + $0x18] sm:$0xf]
        %v598 = vld [vmem:[#allocation8 + $0x1c] sm:$0xf]
        %v599 = vld [vmem:[#allocation8 + $0x20] sm:$0xf]
        %v600 = vld [vmem:[#allocation8 + $0x24] sm:$0xf]
        %v601 = vld [vmem:[#allocation8 + $0x28] sm:$0xf]
        %v602 = vld [vmem:[#allocation8 + $0x2c] sm:$0xf]
        %v603 = vld [vmem:[#allocation8 + $0x30] sm:$0xf]
        %v604 = vld [vmem:[#allocation8 + $0x34] sm:$0xf]
        %v605 = vld [vmem:[#allocation8 + $0x38] sm:$0xf]
        %v606 = vld [vmem:[#allocation8 + $0x3c] sm:$0xf]
        %v607 = vld [vmem:[#allocation8 + $0x40] sm:$0xf]
        %v608 = vld [vmem:[#allocation8 + $0x44] sm:$0xf]
        %v609 = vld [vmem:[#allocation8 + $0x48] sm:$0xf]
        %v610 = vld [vmem:[#allocation8 + $0x4c] sm:$0xf]
        %v611 = vld [vmem:[#allocation8 + $0x50] sm:$0xf]
        %v612 = vld [vmem:[#allocation8 + $0x54] sm:$0xf]
        %v613 = vld [vmem:[#allocation8 + $0x58] sm:$0xf]
        %v614 = vld [vmem:[#allocation8 + $0x5c] sm:$0xf]
        %v615 = vld [vmem:[#allocation8 + $0x60] sm:$0xf]
        %v616 = vld [vmem:[#allocation8 + $0x64] sm:$0xf]
        %v617 = vld [vmem:[#allocation8 + $0x68] sm:$0xf]
        %v618 = vld [vmem:[#allocation8 + $0x6c] sm:$0xf]
        %v619 = vld [vmem:[#allocation8 + $0x70] sm:$0xf]
        %v620 = vld [vmem:[#allocation8 + $0x74] sm:$0xf]
        %v621 = vld [vmem:[#allocation8 + $0x78] sm:$0xf]
        %v622 = vld [vmem:[#allocation8 + $0x7c] sm:$0xf]
        %v623 = vld [vmem:[%s6] sm:$0x1]
        %v625 = vlaneseq
        %v626 = vshrl.u32 %v625, 7
        %v627 = vsub.s32 0, %v626
        %v628 = vrot.slane %v623, %v627
        %v662 = vunpack.c.l.b16 %v591
        %v663 = vunpack.c.l.b16 %v592
        %v664 = vunpack.c.l.b16 %v593
        %v665 = vunpack.c.l.b16 %v594
        %v666 = vunpack.c.l.b16 %v595
        %v667 = vunpack.c.l.b16 %v596
        %v668 = vunpack.c.l.b16 %v597
        %v669 = vunpack.c.l.b16 %v598
        %v670 = vunpack.c.l.b16 %v599
        %v671 = vunpack.c.l.b16 %v600
        %v672 = vunpack.c.l.b16 %v601
        %v673 = vunpack.c.l.b16 %v602
        %v674 = vunpack.c.l.b16 %v603
        %v675 = vunpack.c.l.b16 %v604
        %v676 = vunpack.c.l.b16 %v605
        %v677 = vunpack.c.l.b16 %v606
        %v678 = vunpack.c.l.b16 %v607
        %v679 = vunpack.c.l.b16 %v608
        %v680 = vunpack.c.l.b16 %v609
        %v681 = vunpack.c.l.b16 %v610
        %v682 = vunpack.c.l.b16 %v611
        %v683 = vunpack.c.l.b16 %v612
        %v684 = vunpack.c.l.b16 %v613
        %v685 = vunpack.c.l.b16 %v614
        %v686 = vunpack.c.l.b16 %v615
        %v687 = vunpack.c.l.b16 %v616
        %v688 = vunpack.c.l.b16 %v617
        %v689 = vunpack.c.l.b16 %v618
        %v690 = vunpack.c.l.b16 %v619
        %v691 = vunpack.c.l.b16 %v620
        %v692 = vunpack.c.l.b16 %v621
        %v693 = vunpack.c.l.b16 %v622
        %v694 = vpack.c.b16 %v663, %v662
        %v695 = vpack.c.b16 %v665, %v664
        %v696 = vpack.c.b16 %v667, %v666
        %v697 = vpack.c.b16 %v669, %v668
        %v698 = vpack.c.b16 %v671, %v670
        %v699 = vpack.c.b16 %v673, %v672
        %v700 = vpack.c.b16 %v675, %v674
        %v701 = vpack.c.b16 %v677, %v676
        %v702 = vpack.c.b16 %v679, %v678
        %v703 = vpack.c.b16 %v681, %v680
        %v704 = vpack.c.b16 %v683, %v682
        %v705 = vpack.c.b16 %v685, %v684
        %v706 = vpack.c.b16 %v687, %v686
        %v707 = vpack.c.b16 %v689, %v688
        %v708 = vpack.c.b16 %v691, %v690
        %v709 = vpack.c.b16 %v693, %v692
        %726 = vmatprep.subr.bf16.mxu0 0
        %727 = vmatpush1.bf16.msra.mxu0 %v694
        %728 = vmatprep.subr.bf16.mxu0 0
        %729 = vmatpush1.bf16.msra.mxu0 %v695
        %730 = vmatprep.subr.bf16.mxu0 0
        %731 = vmatpush1.bf16.msra.mxu0 %v696
        %732 = vmatprep.subr.bf16.mxu0 0
        %733 = vmatpush1.bf16.msra.mxu0 %v697
        %734 = vmatprep.subr.bf16.mxu0 0
        %735 = vmatpush1.bf16.msra.mxu0 %v698
        %736 = vmatprep.subr.bf16.mxu0 0
        %737 = vmatpush1.bf16.msra.mxu0 %v699
        %738 = vmatprep.subr.bf16.mxu0 0
        %739 = vmatpush1.bf16.msra.mxu0 %v700
        %740 = vmatprep.subr.bf16.mxu0 0
        %741 = vmatpush1.bf16.msra.mxu0 %v701
        %742 = vmatprep.subr.bf16.mxu0 0
        %743 = vmatpush1.bf16.msra.mxu0 %v702
        %744 = vmatprep.subr.bf16.mxu0 0
        %745 = vmatpush1.bf16.msra.mxu0 %v703
        %746 = vmatprep.subr.bf16.mxu0 0
        %747 = vmatpush1.bf16.msra.mxu0 %v704
        %748 = vmatprep.subr.bf16.mxu0 0
        %749 = vmatpush1.bf16.msra.mxu0 %v705
        %750 = vmatprep.subr.bf16.mxu0 0
        %751 = vmatpush1.bf16.msra.mxu0 %v706
        %752 = vmatprep.subr.bf16.mxu0 0
        %753 = vmatpush1.bf16.msra.mxu0 %v707
        %754 = vmatprep.subr.bf16.mxu0 0
        %755 = vmatpush1.bf16.msra.mxu0 %v708
        %756 = vmatprep.subr.bf16.mxu0 0
        %757 = vmatpush1.bf16.msra.mxu0 %v709
        %758 = vmatprep.mubr.bf16.mxu0 %v590
        %759 = vmatmul.mubr.bf16.gmra.mrb[0].mxu0 %v589
        %v760 = vpop.f32.mrb[0].mxu0
        %v761 = vadd.f32 %v628, %v760
        %v762 = vpop.f32.mrb[0].mxu0
        %v763 = vpop.f32.mrb[0].mxu0
        %v764 = vadd.f32 %v628, %v763
        %v765 = vpop.f32.mrb[0].mxu0
        %766 = vdwg.mxu0
        %767 = vadd.xlane.f32.xlu0 %v761
        %v768 = vpop.xlane.xlu0 %767
        %769 = vadd.xlane.f32.xlu0 %v764
        %v770 = vpop.xlane.xlu0 %769
        %v771 = vsub.f32 %v768, %v761
        %v772 = vsub.f32 %v770, %v764
        %v773 = vmul.f32 %v771, 0.125
        %v774 = vmul.f32 %v772, 0.125
        %v775 = vsub.f32 %v761, %v773
        %v776 = vsub.f32 %v764, %v774
        %778 = vset.pattern.permute.xlu0 8
        %779 = vperm.xlu0 %778, %v775
        %v780 = vpop.permute.xlu0 %779
        %783 = vset.pattern.permute.xlu0 8
        %784 = vperm.xlu0 %783, %v776
        %v785 = vpop.permute.xlu0 %784
        %v787 = vadd.f32 %v761, %v780
        %v788 = vadd.f32 %v764, %v785
        %789 = vst [vmem:[%s340] sm:$0xff] %v787
        %790 = vst [vmem:[%s340 + $0x8] sm:$0xff] %v788
        %s791 = sand.u32 %s186, 1
        %s792 = scalar_lea.sflag [#allocation4], %s791
        %s793 = sand.u32 %s186, 1
        %s794 = smul.addr %s793, 16
        %s795 = scalar_lea.vmem [#allocation10], %s794
        // Predicated region
        $region65: #{tpu_custom_call.1} parent=47 // pred_check
          %p796 = pneg %p196
        $region66: #{tpu_custom_call.1} parent=47 // pred_check_branch
          %798 = sbr.rel (%p796) target = $region68
        $region67: #{tpu_custom_call.1} parent=47 // pred_region
          %s799 = smul.u32 2, %s26
          %s801 = ssub.s32 256, 256
          %802 = vsyncadd %s792, %s801
          %s803 = smul.addr %s799, 128
          %s804 = scalar_lea.hbm %s7, %s803
          %s805 = sshll.u32 %s795, 4
          %s806 = int_to_ptr.vmem [resolvable:$true] %s805
          %811 = dma.vmem_to_hbm [thread:$0]  %s806, 256, %s804, %s792, 128, 128, 8
        $region68: #{tpu_custom_call.1} parent=47 // pred_fallthru
          _
      $region48: #{tpu_custom_call.1} parent=5 // pred_fallthru
        _
      %p812 = scmp.le.s32.totalorder 2, %s21
      // Predicated region
      $region69: #{tpu_custom_call.1} parent=5 // pred_check
        %p813 = pneg %p812
      $region70: #{tpu_custom_call.1} parent=5 // pred_check_branch
        %815 = sbr.rel (%p813) target = $region72
      $region71: #{tpu_custom_call.1} parent=5 // pred_region
        %s816 = ssub.s32 %s21, 2
        // Predicated region
        $region73: #{tpu_custom_call.1} parent=71 // pred_check
          %p817 = pneg %p202
        $region74: #{tpu_custom_call.1} parent=71 // pred_check_branch
          %819 = sbr.rel (%p817) target = $region76
        $region75: #{tpu_custom_call.1} parent=71 // pred_region
          %s820 = sand.u32 %s187, 1
          %s821 = scalar_lea.sflag [#allocation4], %s820
          %s822 = sand.u32 %s187, 1
          %s823 = smul.addr %s822, 16
          %s824 = scalar_lea.vmem [#allocation10], %s823
          %825 = dma.done %s821, 256
        $region76: #{tpu_custom_call.1} parent=71 // pred_fallthru
          _
      $region72: #{tpu_custom_call.1} parent=5 // pred_fallthru
        _
    $region6: #{tpu_custom_call.1} parent=1 // loop_footer
      %s25 = sadd.s32 1, %s21
    $region7: #{tpu_custom_call.1} parent=1 // loop_footer_branch
      %20 = sbr.rel target = $region3
    $region8: #{tpu_custom_call.1} parent=1 // loop_exit
      _
    %826 = vsyncpa [#allocation3], 1
    %s827 = scalar_lea.sflag [#allocation3], 1
    %828 = vsyncpa %s827, 1
    %829 = vsyncpa [#allocation6], 1
    %830 = vsyncpa [#allocation9], 1
    %831 = vsyncpa [#allocation4], 1
    %s832 = scalar_lea.sflag [#allocation4], 1
    %833 = vsyncpa %s832, 1

</llo_original>
